<compile_context>
chip_gen: v6e
topology: v6e:2x2x1
jax: 0.10.0
libtpu: 0.0.40
codegen_flags: <defaults>
</compile_context>

<pallas_src>
import jax
import jax.numpy as jnp
from jax import lax
from jax.experimental import pallas as pl
from jax.experimental.pallas import tpu as pltpu

_EPS = 1e-8  # PyTorch F.cosine_similarity default eps


def _feature_adjuster_kernel(a_ref, b_ref, o_ref):
    # a_ref/b_ref/o_ref: (NB, C, HW_TILE) tile. Channel reduction on axis=1.
    a = a_ref[...]
    b = b_ref[...]

    # Channel reductions accumulate in f32 (no-op casts for f32 inputs).
    a32 = a.astype(jnp.float32)
    b32 = b.astype(jnp.float32)
    dot = jnp.sum(a32 * b32, axis=1, keepdims=True)   # (NB, 1, HW_TILE)
    na2 = jnp.sum(a32 * a32, axis=1, keepdims=True)   # (NB, 1, HW_TILE)
    nb2 = jnp.sum(b32 * b32, axis=1, keepdims=True)   # (NB, 1, HW_TILE)
    # dot / max(||a||*||b||, eps) == dot * rsqrt(max(na2*nb2, eps^2))
    cos = dot * lax.rsqrt(jnp.maximum(na2 * nb2, jnp.float32(_EPS * _EPS)))

    # Final pass stays in the input dtype; cos is broadcast over channels.
    out = jnp.maximum(a + b * cos.astype(a.dtype), 0)  # relu
    o_ref[...] = out.astype(o_ref.dtype)


def _cdiv(a, b):
    return -(-a // b)


def _vmem_budget():
    """Pick (target_tile_bytes, vmem_limit_bytes) from the chip generation."""
    try:
        info = pltpu.get_tpu_info()
        cap = getattr(info, "vmem_capacity_bytes", None)
        if cap is None:
            cap = 64 * 1024 * 1024
    except Exception:
        cap = 64 * 1024 * 1024  # conservative (v7x per-TC size)
    # Leave headroom for Mosaic internal scratch.
    vmem_limit = min(int(cap * 3 // 4), 100 * 1024 * 1024)
    # 3 arrays x 2 pipeline buffers = 6 live tiles, plus in-kernel f32
    # intermediates -> keep one tile at ~1/16 of the scoped limit.
    #   v5e/v6e (128 MiB phys): limit 96 MiB, tile ~6 MiB
    #   v7x     ( 64 MiB /TC) : limit 48 MiB, tile ~3 MiB
    tile_budget = max(512 * 1024, min(8 * 1024 * 1024, vmem_limit // 16))
    return tile_budget, vmem_limit


def _choose_tiles(N, C, HW, dtype, target_tile_bytes):
    """Pick (batch_block, hw_tile) so one (nb, C, hw_tile) tile fits the budget,
    accounting for (sublane, 128) VMEM padding."""
    itemsize = jnp.dtype(dtype).itemsize
    sublane_pack = 8 * max(1, 4 // itemsize)            # f32: 8, bf16: 16, i8: 32
    c_padded = _cdiv(C, sublane_pack) * sublane_pack

    # Bytes occupied in VMEM by one 128-lane spatial chunk of one batch elem.
    bytes_per_128 = c_padded * 128 * itemsize

    # Largest lane-dense spatial tile (multiple of 128) within budget;
    # non-divisor tiles are fine (pl.cdiv grid + masked last block).
    max_chunks = max(1, target_tile_bytes // bytes_per_128)
    hw_chunks = min(max_chunks, _cdiv(HW, 128))
    hw_tile = hw_chunks * 128
    if hw_tile >= HW:
        hw_tile = HW  # full-extent block is always legal

    # Fold batch elements into the tile when per-step work is tiny
    # (amortizes the ~0.35 us per grid-step overhead).
    per_elem_bytes = c_padded * (_cdiv(hw_tile, 128) * 128) * itemsize
    nb = 1
    while nb < N and per_elem_bytes * (nb + 1) <= target_tile_bytes:
        nb += 1

    # Keep at least 2 grid steps when possible so "parallel" axes can shard
    # across both v7x TensorCores (and megacore generally).
    def grid_size(nb_, hw_tile_):
        return _cdiv(N, nb_) * _cdiv(HW, hw_tile_)

    if grid_size(nb, hw_tile) < 2:
        if N >= 2:
            nb = _cdiv(N, 2)
        elif HW > 128:
            hw_tile = max(128, _cdiv(_cdiv(HW, 2), 128) * 128)

    return nb, hw_tile


def feature_adjuster(feature_a, feature_b, *, target_tile_bytes=None):
    """feature_a, feature_b: (N, C, H, W) -> (N, C, H, W)."""
    assert feature_a.shape == feature_b.shape
    assert feature_a.shape[1] == feature_b.shape[1]
    N, C, H, W = feature_a.shape
    HW = H * W
    itemsize = jnp.dtype(feature_a.dtype).itemsize

    auto_tile_bytes, vmem_limit = _vmem_budget()
    if target_tile_bytes is None:
        target_tile_bytes = auto_tile_bytes

    nb, hw_tile = _choose_tiles(N, C, HW, feature_a.dtype, target_tile_bytes)
    grid = (pl.cdiv(N, nb), pl.cdiv(HW, hw_tile))

    a3 = feature_a.reshape(N, C, HW)
    b3 = feature_b.reshape(N, C, HW)

    block = pl.BlockSpec((nb, C, hw_tile), lambda i, j: (i, 0, j))

    cost = pl.CostEstimate(
        flops=9 * N * C * HW + 5 * N * HW,
        transcendentals=N * HW,
        bytes_accessed=3 * N * C * HW * itemsize,
    )

    out3 = pl.pallas_call(
        _feature_adjuster_kernel,
        out_shape=jax.ShapeDtypeStruct((N, C, HW), feature_a.dtype),
        grid_spec=pltpu.PrefetchScalarGridSpec(
            num_scalar_prefetch=0,
            grid=grid,
            in_specs=[block, block],
            out_specs=block,
        ),
        compiler_params=pltpu.CompilerParams(
            dimension_semantics=("parallel", "parallel"),
            vmem_limit_bytes=vmem_limit,
        ),
        cost_estimate=cost,
    )(a3, b3)

    return out3.reshape(N, C, H, W)


def _reference(feature_a, feature_b):
    a = feature_a.astype(jnp.float32)
    b = feature_b.astype(jnp.float32)
    dot = jnp.sum(a * b, axis=1, keepdims=True)
    na = jnp.sqrt(jnp.sum(a * a, axis=1, keepdims=True))
    nb = jnp.sqrt(jnp.sum(b * b, axis=1, keepdims=True))
    cos = dot / jnp.maximum(na * nb, _EPS)
    return jnp.maximum(a + b * cos, 0.0).astype(feature_a.dtype)


if __name__ == "__main__":
    key = jax.random.PRNGKey(0)
    k1, k2, k3, k4, k5, k6 = jax.random.split(key, 6)

    # Check 1: small shape consistent with the module (NCHW), default budget.
    N, C, H, W = 2, 4, 16, 16
    feature_a = jax.random.normal(k1, (N, C, H, W), dtype=jnp.float32)
    feature_b = jax.random.normal(k2, (N, C, H, W), dtype=jnp.float32)
    out = jax.block_until_ready(feature_adjuster(feature_a, feature_b))
    ref = _reference(feature_a, feature_b)
    assert out.shape == (N, C, H, W)
    assert jnp.allclose(out, ref, atol=1e-5, rtol=1e-5)

    # Check 2: tiny budget forces a multi-tile (batch x spatial) grid.
    N2, C2, H2, W2 = 2, 8, 16, 32
    fa2 = jax.random.normal(k3, (N2, C2, H2, W2), dtype=jnp.float32)
    fb2 = jax.random.normal(k4, (N2, C2, H2, W2), dtype=jnp.float32)
    out2 = jax.block_until_ready(feature_adjuster(fa2, fb2, target_tile_bytes=4096))
    ref2 = _reference(fa2, fb2)
    assert jnp.allclose(out2, ref2, atol=1e-5, rtol=1e-5)

    # Check 3: HW not a multiple of 128 with a small budget -> masked partial
    # final spatial block (non-divisor tiling path).
    N3, C3, H3, W3 = 2, 4, 10, 13   # HW = 130
    fa3 = jax.random.normal(k5, (N3, C3, H3, W3), dtype=jnp.float32)
    fb3 = jax.random.normal(k6, (N3, C3, H3, W3), dtype=jnp.float32)
    out3 = jax.block_until_ready(feature_adjuster(fa3, fb3, target_tile_bytes=4096))
    ref3 = _reference(fa3, fb3)
    assert jnp.allclose(out3, ref3, atol=1e-5, rtol=1e-5)

    print("KERNEL_OK")
</pallas_src>

<mosaic_0001>
module attributes {stable_mosaic.version = 11 : i64} {
  func.func @_feature_adjuster_kernel(%arg0: i32, %arg1: i32, %arg2: memref<1x4x256xf32, #tpu.memory_space<vmem>>, %arg3: memref<1x4x256xf32, #tpu.memory_space<vmem>>, %arg4: memref<1x4x256xf32, #tpu.memory_space<vmem>>) attributes {dimension_semantics = [#tpu.dimension_semantics<parallel>, #tpu.dimension_semantics<parallel>], iteration_bounds = array<i64: 2, 1>, scalar_prefetch = 0 : i64, scratch_operands = 0 : i64, tpu.core_type = #tpu.core_type<tc>, window_params = [{transform_indices = @transform_0, window_bounds = array<i64: 1, 4, 256>}, {transform_indices = @transform_1, window_bounds = array<i64: 1, 4, 256>}, {transform_indices = @transform_2, window_bounds = array<i64: 1, 4, 256>}]} {
    %c0 = arith.constant 0 : index
    %c0_0 = arith.constant 0 : index
    %c0_1 = arith.constant 0 : index
    %0 = vector.load %arg2[%c0, %c0_0, %c0_1] : memref<1x4x256xf32, #tpu.memory_space<vmem>>, vector<1x4x256xf32>
    %c0_2 = arith.constant 0 : index
    %c0_3 = arith.constant 0 : index
    %c0_4 = arith.constant 0 : index
    %1 = vector.load %arg3[%c0_2, %c0_3, %c0_4] : memref<1x4x256xf32, #tpu.memory_space<vmem>>, vector<1x4x256xf32>
    %2 = arith.mulf %0, %1 : vector<1x4x256xf32>
    %cst = arith.constant dense<0.000000e+00> : vector<1x256xf32>
    %3 = vector.multi_reduction <add>, %2, %cst [1] : vector<1x4x256xf32> to vector<1x256xf32>
    %4 = vector.shape_cast %3 : vector<1x256xf32> to vector<1x1x256xf32>
    %5 = arith.mulf %0, %0 : vector<1x4x256xf32>
    %cst_5 = arith.constant dense<0.000000e+00> : vector<1x256xf32>
    %6 = vector.multi_reduction <add>, %5, %cst_5 [1] : vector<1x4x256xf32> to vector<1x256xf32>
    %7 = vector.shape_cast %6 : vector<1x256xf32> to vector<1x1x256xf32>
    %8 = arith.mulf %1, %1 : vector<1x4x256xf32>
    %cst_6 = arith.constant dense<0.000000e+00> : vector<1x256xf32>
    %9 = vector.multi_reduction <add>, %8, %cst_6 [1] : vector<1x4x256xf32> to vector<1x256xf32>
    %10 = vector.shape_cast %9 : vector<1x256xf32> to vector<1x1x256xf32>
    %11 = arith.mulf %7, %10 : vector<1x1x256xf32>
    %cst_7 = arith.constant 1.000000e-16 : f32
    %12 = vector.broadcast %cst_7 : f32 to vector<1x1x256xf32>
    %13 = arith.maximumf %11, %12 : vector<1x1x256xf32>
    %14 = math.rsqrt %13 : vector<1x1x256xf32>
    %15 = arith.mulf %4, %14 : vector<1x1x256xf32>
    %16 = vector.broadcast %15 : vector<1x1x256xf32> to vector<1x4x256xf32>
    %17 = arith.mulf %1, %16 : vector<1x4x256xf32>
    %18 = arith.addf %0, %17 : vector<1x4x256xf32>
    %cst_8 = arith.constant 0.000000e+00 : f32
    %19 = vector.broadcast %cst_8 : f32 to vector<1x4x256xf32>
    %20 = arith.maximumf %18, %19 : vector<1x4x256xf32>
    %c0_9 = arith.constant 0 : index
    %c0_10 = arith.constant 0 : index
    %c0_11 = arith.constant 0 : index
    %21 = vector.load %arg4[%c0_9, %c0_10, %c0_11] : memref<1x4x256xf32, #tpu.memory_space<vmem>>, vector<1x4x256xf32>
    tpu.vector_store %arg4[%c0_9, %c0_10, %c0_11], %20 {strides = array<i32>} : memref<1x4x256xf32, #tpu.memory_space<vmem>>, vector<1x4x256xf32>,
    return
  }
  func.func @transform_0(%arg0: i32, %arg1: i32) -> (i32, i32, i32) {
    %c0_i32 = arith.constant 0 : i32
    %c0_i32_0 = arith.constant 0 : i32
    return %arg0, %c0_i32, %arg1 : i32, i32, i32
  }
  func.func @transform_1(%arg0: i32, %arg1: i32) -> (i32, i32, i32) {
    %c0_i32 = arith.constant 0 : i32
    %c0_i32_0 = arith.constant 0 : i32
    return %arg0, %c0_i32, %arg1 : i32, i32, i32
  }
  func.func @transform_2(%arg0: i32, %arg1: i32) -> (i32, i32, i32) {
    %c0_i32 = arith.constant 0 : i32
    %c0_i32_0 = arith.constant 0 : i32
    return %arg0, %c0_i32, %arg1 : i32, i32, i32
  }
}

</mosaic_0001>

<llo_original>
// kernel: tpu_custom_call.1
$region0: #{tpu_custom_call.1}
  #allocation0 [shape = 'u32[]', space=smem, size = 0x4, offset = 0x4, fixed_abs, tag = 'smem constant byte address 0x4 - core index']
  #allocation1 [shape = 'u32[144,128]{1,0:T(1,128)}', space=vmem, size = 0x12000, scoped, tag = 'internal scratch']
  %s0 = inlined_call_operand.hbm [shape: f32[2,4,256], index: 0, kind: input, shape index: {}]
  %s1 = inlined_call_operand.hbm [shape: f32[2,4,256], index: 1, kind: input, shape index: {}]
  %s2 = inlined_call_operand.hbm [shape: f32[2,4,256], index: 2, kind: output, shape index: {}]
  %s3 = sld [smem:[#allocation0]]
  $region49: #{tpu_custom_call.1} parent=0
    _
  %s5 = ssub.s32 1, %s3
  %s6 = scalar_select 0, %s5, %s3
  $region1: #{tpu_custom_call.1} parent=0
    #allocation2 [shape = 'u8[8192]{0}', space=vmem, size = 0x2000, scoped, tag = 'input window, operand 0']
    #allocation3 [shape = 's32[2]{0}', space=sflag, size = 0x8, scoped, tag = 'scoped memory for tpu_custom_call.1']
    #allocation4 [shape = 's32[2]{0}', space=sflag, size = 0x8, scoped, tag = 'scoped memory for tpu_custom_call.1']
    #allocation5 [shape = 'u8[8192]{0}', space=vmem, size = 0x2000, scoped, tag = 'input window, operand 1']
    #allocation6 [shape = 's32[2]{0}', space=sflag, size = 0x8, scoped, tag = 'scoped memory for tpu_custom_call.1']
    #allocation7 [shape = 'u8[8192]{0}', space=vmem, size = 0x2000, scoped, tag = 'output window, operand 0']
    %7 = vsyncpa [#allocation3], 0
    %s8 = scalar_lea.sflag [#allocation3], 1
    %9 = vsyncpa %s8, 0
    %10 = vsyncpa [#allocation6], 0
    %s11 = scalar_lea.sflag [#allocation6], 1
    %12 = vsyncpa %s11, 0
    %13 = vsyncpa [#allocation4], 0
    %s14 = scalar_lea.sflag [#allocation4], 1
    %15 = vsyncpa %s14, 0
    loop: start=0, step=1, limit=4
    $region2: #{tpu_custom_call.1} parent=1 // loop_pre_header
      _
    $region3: #{tpu_custom_call.1} parent=1 // loop_header
      %s17 = sphi 0, %s21
      %p18 = scmp.ge.s32.totalorder %s17, 4
      %s24 = sphi 0, %s36
      %s25 = sphi 0, %s32
      %s26 = sphi 0, %s24
      %s27 = sphi 0, %s25
      %s28 = sphi 0, %s26
      %s29 = sphi 0, %s27
      %s41 = sphi 0, %s43
      %s44 = sphi 0, %s41
      %s45 = sphi 0, %s44
      %s61 = sphi 0, %s45
      %s69 = sphi 0, %s71
      %s72 = sphi 0, %s69
      %s73 = sphi 0, %s72
      %s89 = sphi 0, %s73
      %s97 = sphi 0, %s99
      %s100 = sphi 0, %s97
      %s101 = sphi 0, %s100
      %s117 = sphi 0, %s101
    $region4: #{tpu_custom_call.1} parent=1 // loop_header_branch
      %20 = sbr.rel (%p18) target = $region8
    $region5: #{tpu_custom_call.1} parent=1 // loop_body
      %s22 = ssub.s32 %s17, 1
      %s23 = ssub.s32 %s17, 2
      %s30 = sadd.s32 1, %s25
      %p31 = scmp.ge.s32.totalorder %s30, 1
      %s32 = scalar_select %p31, 0, %s30
      %s33 = sadd.s32 1, %s24
      %s34 = scalar_select %p31, %s33, %s24
      %p35 = scmp.ge.s32.totalorder %s34, 2
      %s36 = scalar_select %p35, 0, %s34
      %s37 = ssub.s32 %s24, %s36
      %s38 = ssub.s32 %s25, %s32
      %s39 = sor.u32 %s37, %s38
      %p40 = scmp.eq.s32.totalorder %s39, 0
      %s42 = sadd.s32 %s41, 1
      %s43 = scalar_select %p40, %s41, %s42
      %p46 = pneg %p40
      %p47 = scmp.eq.s32.totalorder %s17, 1
      %p48 = por %p46, %p47
      %p49 = scmp.ne.s32.totalorder %s41, %s44
      %p50 = scmp.eq.s32.totalorder %s17, 0
      %p51 = por %p49, %p50
      %p52 = scmp.ne.s32.totalorder %s41, %s44
      %p53 = scmp.eq.s32.totalorder %s22, 1
      %p54 = por %p52, %p53
      %p55 = scmp.ne.s32.totalorder %s44, %s45
      %p56 = scmp.eq.s32.totalorder %s22, 0
      %p57 = por %p55, %p56
      %p58 = scmp.ne.s32.totalorder %s44, %s45
      %p59 = scmp.eq.s32.totalorder %s23, 1
      %p60 = por %p58, %p59
      %p62 = scmp.ne.s32.totalorder %s45, %s61
      %p63 = scmp.eq.s32.totalorder %s23, 0
      %p64 = por %p62, %p63
      %s65 = ssub.s32 %s24, %s36
      %s66 = ssub.s32 %s25, %s32
      %s67 = sor.u32 %s65, %s66
      %p68 = scmp.eq.s32.totalorder %s67, 0
      %s70 = sadd.s32 %s69, 1
      %s71 = scalar_select %p68, %s69, %s70
      %p74 = pneg %p68
      %p75 = scmp.eq.s32.totalorder %s17, 1
      %p76 = por %p74, %p75
      %p77 = scmp.ne.s32.totalorder %s69, %s72
      %p78 = scmp.eq.s32.totalorder %s17, 0
      %p79 = por %p77, %p78
      %p80 = scmp.ne.s32.totalorder %s69, %s72
      %p81 = scmp.eq.s32.totalorder %s22, 1
      %p82 = por %p80, %p81
      %p83 = scmp.ne.s32.totalorder %s72, %s73
      %p84 = scmp.eq.s32.totalorder %s22, 0
      %p85 = por %p83, %p84
      %p86 = scmp.ne.s32.totalorder %s72, %s73
      %p87 = scmp.eq.s32.totalorder %s23, 1
      %p88 = por %p86, %p87
      %p90 = scmp.ne.s32.totalorder %s73, %s89
      %p91 = scmp.eq.s32.totalorder %s23, 0
      %p92 = por %p90, %p91
      %s93 = ssub.s32 %s24, %s36
      %s94 = ssub.s32 %s25, %s32
      %s95 = sor.u32 %s93, %s94
      %p96 = scmp.eq.s32.totalorder %s95, 0
      %s98 = sadd.s32 %s97, 1
      %s99 = scalar_select %p96, %s97, %s98
      %p102 = pneg %p96
      %p103 = scmp.eq.s32.totalorder %s17, 1
      %p104 = por %p102, %p103
      %p105 = scmp.ne.s32.totalorder %s97, %s100
      %p106 = scmp.eq.s32.totalorder %s17, 0
      %p107 = por %p105, %p106
      %p108 = scmp.ne.s32.totalorder %s97, %s100
      %p109 = scmp.eq.s32.totalorder %s22, 1
      %p110 = por %p108, %p109
      %p111 = scmp.ne.s32.totalorder %s100, %s101
      %p112 = scmp.eq.s32.totalorder %s22, 0
      %p113 = por %p111, %p112
      %p114 = scmp.ne.s32.totalorder %s100, %s101
      %p115 = scmp.eq.s32.totalorder %s23, 1
      %p116 = por %p114, %p115
      %p118 = scmp.ne.s32.totalorder %s101, %s117
      %p119 = scmp.eq.s32.totalorder %s23, 0
      %p120 = por %p118, %p119
      %p121 = scmp.le.s32.totalorder 1, %s17
      %p122 = scmp.lt.s32.totalorder %s17, 3
      %p123 = pnand %p121, %p122
      %p124 = pneg %p123
      // Predicated region
      $region9: #{tpu_custom_call.1} parent=5 // pred_check
        _
      $region10: #{tpu_custom_call.1} parent=5 // pred_check_branch
        %126 = sbr.rel (%p123) target = $region12
      $region11: #{tpu_custom_call.1} parent=5 // pred_region
        %s127 = ssub.s32 %s17, 1
      $region12: #{tpu_custom_call.1} parent=5 // pred_fallthru
        _
      %p128 = scmp.lt.s32.totalorder %s17, 2
      // Predicated region
      $region13: #{tpu_custom_call.1} parent=5 // pred_check
        %p129 = pneg %p128
      $region14: #{tpu_custom_call.1} parent=5 // pred_check_branch
        %131 = sbr.rel (%p129) target = $region16
      $region15: #{tpu_custom_call.1} parent=5 // pred_region
        // Predicated region
        $region17: #{tpu_custom_call.1} parent=15 // pred_check
          %p132 = pneg %p51
        $region18: #{tpu_custom_call.1} parent=15 // pred_check_branch
          %134 = sbr.rel (%p132) target = $region20
        $region19: #{tpu_custom_call.1} parent=15 // pred_region
          %s135 = sand.u32 %s41, 1
          %s136 = scalar_lea.sflag [#allocation3], %s135
          %s137 = sand.u32 %s41, 1
          %s138 = smul.addr %s137, 8
          %s139 = scalar_lea.vmem [#allocation2], %s138
          %s140 = smul.u32 2, %s25
          %s142 = ssub.s32 128, 128
          %143 = vsyncadd %s136, %s142
          %s144 = smul.addr %s24, 2
          %s145 = sadd.s32 %s140, %s144
          %s146 = smul.addr %s145, 64
          %s147 = scalar_lea.hbm %s0, %s146
          %s149 = sshll.u32 %s139, 4
          %s150 = int_to_ptr.vmem [resolvable:$true] %s149
          %152 = dma.hbm_to_vmem [thread:$0]  %s147, 128, %s150, %s136
        $region20: #{tpu_custom_call.1} parent=15 // pred_fallthru
          _
        // Predicated region
        $region21: #{tpu_custom_call.1} parent=15 // pred_check
          %p153 = pneg %p79
        $region22: #{tpu_custom_call.1} parent=15 // pred_check_branch
          %155 = sbr.rel (%p153) target = $region24
        $region23: #{tpu_custom_call.1} parent=15 // pred_region
          %s156 = sand.u32 %s69, 1
          %s157 = scalar_lea.sflag [#allocation6], %s156
          %s158 = sand.u32 %s69, 1
          %s159 = smul.addr %s158, 8
          %s160 = scalar_lea.vmem [#allocation5], %s159
          %s161 = smul.u32 2, %s25
          %s163 = ssub.s32 128, 128
          %164 = vsyncadd %s157, %s163
          %s165 = smul.addr %s24, 2
          %s166 = sadd.s32 %s161, %s165
          %s167 = smul.addr %s166, 64
          %s168 = scalar_lea.hbm %s1, %s167
          %s170 = sshll.u32 %s160, 4
          %s171 = int_to_ptr.vmem [resolvable:$true] %s170
          %173 = dma.hbm_to_vmem [thread:$0]  %s168, 128, %s171, %s157
        $region24: #{tpu_custom_call.1} parent=15 // pred_fallthru
          _
      $region16: #{tpu_custom_call.1} parent=5 // pred_fallthru
        _
      %p174 = scmp.le.s32.totalorder 1, %s17
      %p175 = scmp.lt.s32.totalorder %s17, 3
      %p176 = pnand %p174, %p175
      %p177 = pneg %p176
      // Predicated region
      $region25: #{tpu_custom_call.1} parent=5 // pred_check
        _
      $region26: #{tpu_custom_call.1} parent=5 // pred_check_branch
        %179 = sbr.rel (%p176) target = $region28
      $region27: #{tpu_custom_call.1} parent=5 // pred_region
        %s180 = ssub.s32 %s17, 1
        %s181 = sand.u32 %s44, 1
        %s182 = scalar_lea.sflag [#allocation3], %s181
        %s183 = sand.u32 %s44, 1
        %s184 = smul.addr %s183, 8
        %s185 = scalar_lea.vmem [#allocation2], %s184
        // Predicated region
        $region29: #{tpu_custom_call.1} parent=27 // pred_check
          %p186 = pneg %p57
        $region30: #{tpu_custom_call.1} parent=27 // pred_check_branch
          %188 = sbr.rel (%p186) target = $region32
        $region31: #{tpu_custom_call.1} parent=27 // pred_region
          %189 = dma.done %s182, 128
        $region32: #{tpu_custom_call.1} parent=27 // pred_fallthru
          _
        %s190 = sand.u32 %s72, 1
        %s191 = scalar_lea.sflag [#allocation6], %s190
        %s192 = sand.u32 %s72, 1
        %s193 = smul.addr %s192, 8
        %s194 = scalar_lea.vmem [#allocation5], %s193
        // Predicated region
        $region33: #{tpu_custom_call.1} parent=27 // pred_check
          %p195 = pneg %p85
        $region34: #{tpu_custom_call.1} parent=27 // pred_check_branch
          %197 = sbr.rel (%p195) target = $region36
        $region35: #{tpu_custom_call.1} parent=27 // pred_region
          %198 = dma.done %s191, 128
        $region36: #{tpu_custom_call.1} parent=27 // pred_fallthru
          _
        %s199 = sand.u32 %s44, 1
        %s200 = scalar_lea.sflag [#allocation3], %s199
        %s201 = sand.u32 %s44, 1
        %s202 = smul.addr %s201, 8
        %s203 = scalar_lea.vmem [#allocation2], %s202
        %p204 = pneg %p57
        %p205 = pneg %p54
        %s206 = sand.u32 %s72, 1
        %s207 = scalar_lea.sflag [#allocation6], %s206
        %s208 = sand.u32 %s72, 1
        %s209 = smul.addr %s208, 8
        %s210 = scalar_lea.vmem [#allocation5], %s209
        %p211 = pneg %p85
        %p212 = pneg %p82
        %p213 = pneg %p113
        %p214 = pneg %p110
        %s215 = sand.u32 %s100, 1
        %s216 = scalar_lea.sflag [#allocation4], %s215
        %s217 = sand.u32 %s100, 1
        %s218 = smul.addr %s217, 8
        %s219 = scalar_lea.vmem [#allocation7], %s218
        %s220 = smul.u32 2, %s27
        %s221 = smul.u32 2, %s27
        %s222 = smul.u32 2, %s27
        %v223 = vld [vmem:[%s185] sm:$0xff]
        %v224 = vld [vmem:[%s194] sm:$0xff]
        %v225 = vmul.f32 %v223, %v224
        %v227 = vcombine.high %v225, %v225
        %vm229 = vcmask 1043456
        %v230 = vsel %vm229, %v225, 0.0
        %v231 = vrot.slane %v230, 4
        %v232 = vadd.f32 %v230, %v231
        %v233 = vrot.slane %v232, 2
        %v234 = vadd.f32 %v232, %v233
        %v235 = vrot.slane %v234, 1
        %v236 = vadd.f32 %v234, %v235
        %v237 = vsel %vm229, %v227, 0.0
        %v238 = vrot.slane %v237, 4
        %v239 = vadd.f32 %v237, %v238
        %v240 = vrot.slane %v239, 2
        %v241 = vadd.f32 %v239, %v240
        %v242 = vrot.slane %v241, 1
        %v243 = vadd.f32 %v241, %v242
        %v244 = vmul.f32 %v223, %v223
        %v246 = vcombine.high %v244, %v244
        %v248 = vsel %vm229, %v244, 0.0
        %v249 = vrot.slane %v248, 4
        %v250 = vadd.f32 %v248, %v249
        %v251 = vrot.slane %v250, 2
        %v252 = vadd.f32 %v250, %v251
        %v253 = vrot.slane %v252, 1
        %v254 = vadd.f32 %v252, %v253
        %v255 = vsel %vm229, %v246, 0.0
        %v256 = vrot.slane %v255, 4
        %v257 = vadd.f32 %v255, %v256
        %v258 = vrot.slane %v257, 2
        %v259 = vadd.f32 %v257, %v258
        %v260 = vrot.slane %v259, 1
        %v261 = vadd.f32 %v259, %v260
        %v262 = vmul.f32 %v224, %v224
        %v264 = vcombine.high %v262, %v262
        %v266 = vsel %vm229, %v262, 0.0
        %v267 = vrot.slane %v266, 4
        %v268 = vadd.f32 %v266, %v267
        %v269 = vrot.slane %v268, 2
        %v270 = vadd.f32 %v268, %v269
        %v271 = vrot.slane %v270, 1
        %v272 = vadd.f32 %v270, %v271
        %v273 = vsel %vm229, %v264, 0.0
        %v274 = vrot.slane %v273, 4
        %v275 = vadd.f32 %v273, %v274
        %v276 = vrot.slane %v275, 2
        %v277 = vadd.f32 %v275, %v276
        %v278 = vrot.slane %v277, 1
        %v279 = vadd.f32 %v277, %v278
        %v280 = vmul.f32 %v254, %v272
        %v281 = vmul.f32 %v261, %v279
        %v282 = vmax.f32 %v280, 1e-16
        %v283 = vmax.f32 %v281, 1e-16
        %v284 = vrsqrt.pop %v282
        %v285 = vrsqrt.pop %v283
        %v286 = vmul.f32 %v236, %v284
        %v287 = vmul.f32 %v243, %v285
        %v290 = vcombine.low %v286, %v287
        %v292 = vmul.f32 %v224, %v290
        %v293 = vadd.f32 %v223, %v292
        %v294 = vmax.f32 %v293, 0.0
        %295 = vst [vmem:[%s219] sm:$0xff] %v294
        %s296 = sand.u32 %s100, 1
        %s297 = scalar_lea.sflag [#allocation4], %s296
        %s298 = sand.u32 %s100, 1
        %s299 = smul.addr %s298, 8
        %s300 = scalar_lea.vmem [#allocation7], %s299
        // Predicated region
        $region37: #{tpu_custom_call.1} parent=27 // pred_check
          %p301 = pneg %p110
        $region38: #{tpu_custom_call.1} parent=27 // pred_check_branch
          %303 = sbr.rel (%p301) target = $region40
        $region39: #{tpu_custom_call.1} parent=27 // pred_region
          %s304 = smul.u32 2, %s27
          %s306 = ssub.s32 128, 128
          %307 = vsyncadd %s297, %s306
          %s308 = smul.addr %s26, 2
          %s309 = sadd.s32 %s304, %s308
          %s310 = smul.addr %s309, 64
          %s311 = scalar_lea.hbm %s2, %s310
          %s313 = sshll.u32 %s300, 4
          %s314 = int_to_ptr.vmem [resolvable:$true] %s313
          %316 = dma.vmem_to_hbm [thread:$0]  %s314, 128, %s311, %s297
        $region40: #{tpu_custom_call.1} parent=27 // pred_fallthru
          _
      $region28: #{tpu_custom_call.1} parent=5 // pred_fallthru
        _
      %p317 = scmp.le.s32.totalorder 2, %s17
      // Predicated region
      $region41: #{tpu_custom_call.1} parent=5 // pred_check
        %p318 = pneg %p317
      $region42: #{tpu_custom_call.1} parent=5 // pred_check_branch
        %320 = sbr.rel (%p318) target = $region44
      $region43: #{tpu_custom_call.1} parent=5 // pred_region
        %s321 = ssub.s32 %s17, 2
        // Predicated region
        $region45: #{tpu_custom_call.1} parent=43 // pred_check
          %p322 = pneg %p116
        $region46: #{tpu_custom_call.1} parent=43 // pred_check_branch
          %324 = sbr.rel (%p322) target = $region48
        $region47: #{tpu_custom_call.1} parent=43 // pred_region
          %s325 = sand.u32 %s101, 1
          %s326 = scalar_lea.sflag [#allocation4], %s325
          %s327 = sand.u32 %s101, 1
          %s328 = smul.addr %s327, 8
          %s329 = scalar_lea.vmem [#allocation7], %s328
          %330 = dma.done %s326, 128
        $region48: #{tpu_custom_call.1} parent=43 // pred_fallthru
          _
      $region44: #{tpu_custom_call.1} parent=5 // pred_fallthru
        _
    $region6: #{tpu_custom_call.1} parent=1 // loop_footer
      %s21 = sadd.s32 1, %s17
    $region7: #{tpu_custom_call.1} parent=1 // loop_footer_branch
      %16 = sbr.rel target = $region3
    $region8: #{tpu_custom_call.1} parent=1 // loop_exit
      _
    %331 = vsyncpa [#allocation3], 1
    %s332 = scalar_lea.sflag [#allocation3], 1
    %333 = vsyncpa %s332, 1
    %334 = vsyncpa [#allocation6], 1
    %s335 = scalar_lea.sflag [#allocation6], 1
    %336 = vsyncpa %s335, 1
    %337 = vsyncpa [#allocation4], 1
    %s338 = scalar_lea.sflag [#allocation4], 1
    %339 = vsyncpa %s338, 1

</llo_original>
